<compile_context>
chip_gen: v7x
topology: tpu7x:2x2x1
jax: 0.10.0
libtpu: 0.0.40
codegen_flags: <defaults>
</compile_context>

<pallas_src>
import jax
import jax.numpy as jnp
from jax.experimental import pallas as pl
from jax.experimental.pallas import tpu as pltpu


def _sigmoid_kernel(x_ref, o_ref):
    # Elementwise sigmoid on the VMEM tile: exp lands on the EUP, add/divide
    # on the VPU.  (pl.reciprocal(..., approx=True) could shave the divide on
    # v7x, but the exact form keeps accuracy and the kernel is HBM-bound.)
    x = x_ref[...]
    y = 1.0 / (1.0 + jnp.exp(-x))          # weak typing keeps bf16 in bf16
    o_ref[...] = y.astype(o_ref.dtype)


def sigmoid(x, *, target_tile_bytes=2 * 1024 * 1024):
    """Elementwise sigmoid via a lane-dense, tiled Pallas TPU kernel.

    Accepts arbitrary-rank input; semantics match torch.sigmoid(inputs)
    (floating inputs keep their dtype, integer inputs promote to float32).
    """
    orig_shape = x.shape
    n = x.size

    if jnp.issubdtype(x.dtype, jnp.floating):
        out_dtype = x.dtype
        compute_dtype = x.dtype if x.dtype in (jnp.float32, jnp.bfloat16) else jnp.float32
    else:
        out_dtype = jnp.float32
        compute_dtype = jnp.float32

    if n == 0:
        return jnp.zeros(orig_shape, dtype=out_dtype)

    flat = x.reshape(-1)
    if flat.dtype != compute_dtype:
        flat = flat.astype(compute_dtype)

    # Lane-dense 2-D view: largest lane width (multiple of 128) that divides
    # the element count, so the reshape is free (no padding copy).
    lane = None
    for cand in (1024, 512, 256, 128):
        if n % cand == 0:
            lane = cand
            break
    if lane is None:
        # Rare ragged case: pad the flat array by < 128 elements.
        lane = 128
        n_pad = ((n + lane - 1) // lane) * lane
        flat = jnp.pad(flat, (0, n_pad - n))
    else:
        n_pad = n
    rows = n_pad // lane
    x2 = flat.reshape(rows, lane)

    # Row-tile sized for ~target_tile_bytes per buffer; 2 in + 2 out buffers
    # under double buffering stay within every generation's scoped VMEM.
    itemsize = jnp.dtype(compute_dtype).itemsize
    tr = max(8, target_tile_bytes // (lane * itemsize))
    tr = (tr // 8) * 8
    if tr >= rows:
        tr = rows                      # full-dim row block (allowed for any size)
    grid = (pl.cdiv(rows, tr),)        # ragged last block handled by Pallas

    out2 = pl.pallas_call(
        _sigmoid_kernel,
        out_shape=jax.ShapeDtypeStruct((rows, lane), out_dtype),
        grid_spec=pltpu.PrefetchScalarGridSpec(
            num_scalar_prefetch=0,
            grid=grid,
            in_specs=[pl.BlockSpec((tr, lane), lambda i: (i, 0))],
            out_specs=pl.BlockSpec((tr, lane), lambda i: (i, 0)),
        ),
        compiler_params=pltpu.CompilerParams(
            dimension_semantics=("parallel",),
        ),
    )(x2)

    out_flat = out2.reshape(-1)
    if n_pad != n:
        out_flat = out_flat[:n]
    return out_flat.reshape(orig_shape)


class SigmoidPallas:
    """Mirrors the PyTorch Sigmoid module (stateless, no parameters)."""

    def __init__(self):
        self.s = 0
        self.x = 0

    def forward(self, inputs):
        self.s = inputs
        self.x = sigmoid(inputs)
        return self.x

    def param(self):
        return [(None, None)]


if __name__ == "__main__":
    key = jax.random.PRNGKey(0)
    # NCHW conv-style activation input.
    x = jax.random.normal(key, (2, 4, 16, 16), dtype=jnp.float32)

    mod = SigmoidPallas()
    y = jax.block_until_ready(mod.forward(x))

    ref = jax.nn.sigmoid(x)
    assert y.shape == x.shape and y.dtype == x.dtype
    assert jnp.max(jnp.abs(y - ref)) < 1e-6

    # Ragged total-size path (element count not a multiple of 128).
    x_odd = jax.random.normal(jax.random.PRNGKey(0), (3, 7, 5), dtype=jnp.float32)
    y_odd = jax.block_until_ready(sigmoid(x_odd))
    assert y_odd.shape == x_odd.shape and y_odd.dtype == x_odd.dtype
    assert jnp.max(jnp.abs(y_odd - jax.nn.sigmoid(x_odd))) < 1e-6

    print("KERNEL_OK")
</pallas_src>

<mosaic_0001>
module attributes {stable_mosaic.version = 11 : i64} {
  func.func @_sigmoid_kernel(%arg0: i32, %arg1: memref<2x1024xf32, #tpu.memory_space<vmem>>, %arg2: memref<2x1024xf32, #tpu.memory_space<vmem>>) attributes {dimension_semantics = [#tpu.dimension_semantics<parallel>], iteration_bounds = array<i64: 1>, scalar_prefetch = 0 : i64, scratch_operands = 0 : i64, tpu.core_type = #tpu.core_type<tc>, window_params = [{transform_indices = @transform_0, window_bounds = array<i64: 2, 1024>}, {transform_indices = @transform_1, window_bounds = array<i64: 2, 1024>}]} {
    %c0 = arith.constant 0 : index
    %c0_0 = arith.constant 0 : index
    %0 = vector.load %arg1[%c0, %c0_0] : memref<2x1024xf32, #tpu.memory_space<vmem>>, vector<2x1024xf32>
    %cst = arith.constant 0.000000e+00 : f32
    %1 = vector.broadcast %cst : f32 to vector<2x1024xf32>
    %2 = arith.subf %1, %0 : vector<2x1024xf32>
    %3 = math.exp %2 : vector<2x1024xf32>
    %cst_1 = arith.constant 1.000000e+00 : f32
    %4 = vector.broadcast %cst_1 : f32 to vector<2x1024xf32>
    %5 = arith.addf %4, %3 : vector<2x1024xf32>
    %cst_2 = arith.constant 1.000000e+00 : f32
    %6 = vector.broadcast %cst_2 : f32 to vector<2x1024xf32>
    %7 = arith.divf %6, %5 : vector<2x1024xf32>
    %c0_3 = arith.constant 0 : index
    %c0_4 = arith.constant 0 : index
    %8 = vector.load %arg2[%c0_3, %c0_4] : memref<2x1024xf32, #tpu.memory_space<vmem>>, vector<2x1024xf32>
    tpu.vector_store %arg2[%c0_3, %c0_4], %7 {strides = array<i32>} : memref<2x1024xf32, #tpu.memory_space<vmem>>, vector<2x1024xf32>,
    return
  }
  func.func @transform_0(%arg0: i32) -> (i32, i32) {
    %c0_i32 = arith.constant 0 : i32
    %c0_i32_0 = arith.constant 0 : i32
    return %arg0, %c0_i32 : i32, i32
  }
  func.func @transform_1(%arg0: i32) -> (i32, i32) {
    %c0_i32 = arith.constant 0 : i32
    %c0_i32_0 = arith.constant 0 : i32
    return %arg0, %c0_i32 : i32, i32
  }
}

</mosaic_0001>

<llo_original>
// kernel: tpu_custom_call.1
$region0: #{tpu_custom_call.1}
  #allocation0 [shape = 'u32[]', space=smem, size = 0x4, offset = 0x4, fixed_abs, tag = 'smem constant byte address 0x4 - core index']
  #allocation1 [shape = 'u32[144,128]{1,0:T(1,128)}', space=vmem, size = 0x12000, scoped, tag = 'internal scratch']
  %s0 = inlined_call_operand.hbm [shape: f32[2,1024], index: 0, kind: input, shape index: {}]
  %s1 = inlined_call_operand.hbm [shape: f32[2,1024], index: 1, kind: output, shape index: {}]
  %s2 = sld [smem:[#allocation0]]
  $region18: #{tpu_custom_call.1} parent=0
    _
  %s4 = ssub.s32 1, %s2
  %s5 = scalar_select 0, %s4, %s2
  $region1: #{tpu_custom_call.1} parent=0
    #allocation2 [shape = 'u8[8192]{0}', space=vmem, size = 0x2000, scoped, tag = 'input window, operand 0, single buffered']
    #allocation3 [shape = 's32[1]{0}', space=sflag, size = 0x4, scoped, tag = 'scoped memory for tpu_custom_call.1']
    #allocation4 [shape = 's32[1]{0}', space=sflag, size = 0x4, scoped, tag = 'scoped memory for tpu_custom_call.1']
    #allocation5 [shape = 'u8[8192]{0}', space=vmem, size = 0x2000, scoped, tag = 'output window, operand 0, single buffered']
    %6 = vsyncpa [#allocation3], 0
    %7 = vsyncpa [#allocation4], 0
    // Predicated region
    $region2: #{tpu_custom_call.1} parent=1 // pred_check
      _
    $region3: #{tpu_custom_call.1} parent=1 // pred_check_branch
      %9 = sbr.rel (0) target = $region5
    $region4: #{tpu_custom_call.1} parent=1 // pred_region
      %s11 = ssub.s32 256, 256
      %12 = vsyncadd [#allocation3], %s11
      %s14 = sshll.u32 [#allocation2], 4
      %s15 = int_to_ptr.vmem [resolvable:$true] %s14
      %17 = dma.hbm_to_vmem [thread:$0]  %s0, 256, %s15, [#allocation3]
    $region5: #{tpu_custom_call.1} parent=1 // pred_fallthru
      _
    // Predicated region
    $region6: #{tpu_custom_call.1} parent=1 // pred_check
      _
    $region7: #{tpu_custom_call.1} parent=1 // pred_check_branch
      %19 = sbr.rel (0) target = $region9
    $region8: #{tpu_custom_call.1} parent=1 // pred_region
      %20 = dma.done [#allocation3], 256
    $region9: #{tpu_custom_call.1} parent=1 // pred_fallthru
      _
    %v21 = vld [vmem:[#allocation2] sm:$0xff]
    %v22 = vld [vmem:[#allocation2 + $0x8] sm:$0xff]
    %v23 = vsub.f32 0.0, %v21
    %v24 = vsub.f32 0.0, %v22
    %v25 = vmul.f32 %v23, 1.442695
    %v26 = vpow.pop %v25
    %v27 = vmul.f32 %v24, 1.442695
    %v28 = vpow.pop %v27
    %v29 = vadd.f32 %v26, 1.0
    %v30 = vadd.f32 %v28, 1.0
    %v31 = vrcp.pop %v29
    %v32 = vmul.f32 1.0, %v31
    %v33 = vrcp.pop %v30
    %v34 = vmul.f32 1.0, %v33
    %35 = vst [vmem:[#allocation5] sm:$0xff] %v32
    %36 = vst [vmem:[#allocation5 + $0x8] sm:$0xff] %v34
    // Predicated region
    $region10: #{tpu_custom_call.1} parent=1 // pred_check
      _
    $region11: #{tpu_custom_call.1} parent=1 // pred_check_branch
      %38 = sbr.rel (0) target = $region13
    $region12: #{tpu_custom_call.1} parent=1 // pred_region
      %s40 = ssub.s32 256, 256
      %41 = vsyncadd [#allocation4], %s40
      %s43 = sshll.u32 [#allocation5], 4
      %s44 = int_to_ptr.vmem [resolvable:$true] %s43
      %46 = dma.vmem_to_hbm [thread:$0]  %s44, 256, %s1, [#allocation4]
    $region13: #{tpu_custom_call.1} parent=1 // pred_fallthru
      _
    // Predicated region
    $region14: #{tpu_custom_call.1} parent=1 // pred_check
      _
    $region15: #{tpu_custom_call.1} parent=1 // pred_check_branch
      %48 = sbr.rel (0) target = $region17
    $region16: #{tpu_custom_call.1} parent=1 // pred_region
      %49 = dma.done [#allocation4], 256
    $region17: #{tpu_custom_call.1} parent=1 // pred_fallthru
      _
    %50 = vsyncpa [#allocation3], 1
    %51 = vsyncpa [#allocation4], 1

</llo_original>
